<compile_context>
chip_gen: v5e
topology: v5e:2x2
jax: 0.10.0
libtpu: 0.0.40
codegen_flags: <defaults>
</compile_context>

<pallas_src>
import functools

import jax
import jax.numpy as jnp
from jax.experimental import pallas as pl
from jax.experimental.pallas import tpu as pltpu


_VMEM_LIMIT_BYTES = 48 * 1024 * 1024   # safe on v5e/v6e (128 MiB) and v7x (64 MiB)
_ROW_BUDGET_BYTES = 8 * 1024 * 1024    # per-step block budget (Pallas double-buffers)
_MAX_ROWS_PER_STEP = 32                # cap the static in-kernel unroll over rows


# --------------------------------------------------------------------------
# Shared helper: Conv1d for one batch row as a single bf16 MXU matmul (f32 acc)
# --------------------------------------------------------------------------
def _conv_row(x_ref, w, b, *, ksize, stride, dilation, l_out):
    # x_ref: (Bn, C_in, L_pad) bf16 ref ; w: (C_out, K*C_in) bf16 value
    # returns (C_out, L_out) f32
    if stride == 1:
        taps = [x_ref[b, :, k * dilation: k * dilation + l_out] for k in range(ksize)]
    else:
        # TODO(synk): stride > 1 path (strided Ref load) is not exercised by the test.
        taps = [x_ref[b, :, pl.ds(k * dilation, l_out, stride=stride)] for k in range(ksize)]
    patch = taps[0] if ksize == 1 else jnp.concatenate(taps, axis=0)   # (K*C_in, L_out)
    return jnp.dot(w, patch, preferred_element_type=jnp.float32)


# --------------------------------------------------------------------------
# Pass 1: conv + per-tile partial per-channel sum / sumsq (no y written to HBM)
# --------------------------------------------------------------------------
def _conv_stats_kernel(x_ref, w_ref, stats_ref, *, ksize, stride, dilation,
                       bn_rows, l_out):
    # x_ref: (Bn, C_in, L_pad) bf16 ; w_ref: (C_out, K*C_in) bf16
    # stats_ref: (1, C_out, 2) f32 -- this tile's partial [sum, sumsq]
    w = w_ref[...]
    c_out = w.shape[0]
    s = jnp.zeros((c_out, 1), jnp.float32)
    ss = jnp.zeros((c_out, 1), jnp.float32)
    for b in range(bn_rows):                      # small static unroll
        y = _conv_row(x_ref, w, b, ksize=ksize, stride=stride,
                      dilation=dilation, l_out=l_out)
        s = s + jnp.sum(y, axis=1, keepdims=True)
        ss = ss + jnp.sum(y * y, axis=1, keepdims=True)
    stats_ref[0] = jnp.concatenate([s, ss], axis=1)   # single merged store


# --------------------------------------------------------------------------
# Pass 2: conv recompute + per-channel FMA (BN) + LeakyReLU
# --------------------------------------------------------------------------
def _conv_bn_act_kernel(x_ref, w_ref, scale_ref, shift_ref, o_ref, *, ksize,
                        stride, dilation, bn_rows, l_out, neg_slope):
    # scale_ref/shift_ref: (C_out, 1) f32 ; o_ref: (Bn, C_out, L_out) f32
    w = w_ref[...]
    scale = scale_ref[...]
    shift = shift_ref[...]
    for b in range(bn_rows):
        y = _conv_row(x_ref, w, b, ksize=ksize, stride=stride,
                      dilation=dilation, l_out=l_out)
        z = y * scale + shift
        o_ref[b] = jnp.where(z > 0, z, neg_slope * z)


# --------------------------------------------------------------------------
# Wrapper
# --------------------------------------------------------------------------
def conv_block_forward(x, weight, bias=None, gamma=None, beta=None, *,
                       stride=1, padding=0, dilation=1, eps=1e-5, neg_slope=0.01):
    """Fused ConvBlock forward.

    x:      (N, C_in, L)       f32
    weight: (C_out, C_in, K)   f32   (groups == 1)
    bias:   (C_out,) or None   -- exactly cancelled by train-mode BN mean
                                  subtraction, so intentionally unused.
    gamma/beta: optional BN affine params (default 1/0 = PyTorch init).
    returns (N, C_out, L_out)  f32
    """
    del bias  # mathematically a no-op under train-mode BatchNorm
    # TODO(synk): groups > 1 not implemented (kdnet ConvBlock uses groups=1).
    # TODO(synk): BatchNorm running-stat buffer updates (module side state) are
    #             not modeled; they do not affect the train-mode forward output.
    N, C_in, L = x.shape
    C_out, c_in_w, K = weight.shape
    assert c_in_w == C_in, "groups != 1 is not supported"
    L_out = (L + 2 * padding - dilation * (K - 1) - 1) // stride + 1
    assert L_out > 0
    L_pad = L + 2 * padding

    # Stage padded input once, already in bf16.
    x_pad = x if padding == 0 else jnp.pad(x, ((0, 0), (0, 0), (padding, padding)))
    x_pad = x_pad.astype(jnp.bfloat16)
    # (C_out, C_in, K) -> (C_out, K*C_in); column index k*C_in + c matches the
    # in-kernel tap-major patch concatenation.
    w2d = jnp.transpose(weight, (0, 2, 1)).reshape(C_out, K * C_in).astype(jnp.bfloat16)

    # Batch rows per grid step: largest divisor of N within the VMEM budget.
    per_row_bytes = C_in * L_pad * 2 + C_out * L_out * 4   # bf16 in + f32 out
    bn_rows = 1
    for d in range(1, min(N, _MAX_ROWS_PER_STEP) + 1):
        if N % d == 0 and d * per_row_bytes <= _ROW_BUDGET_BYTES:
            bn_rows = d
    G = N // bn_rows
    # TODO(synk): rows with C_in*L_pad too large for VMEM would additionally need
    #             an L-tiled grid with a (K-1)*dilation halo; not needed for kdnet.

    cparams = pltpu.CompilerParams(
        dimension_semantics=("parallel",), vmem_limit_bytes=_VMEM_LIMIT_BYTES)

    # ---- pass 1: conv + partial stats (grid over batch tiles, fully parallel) ----
    stats = pl.pallas_call(
        functools.partial(_conv_stats_kernel, ksize=K, stride=stride,
                          dilation=dilation, bn_rows=bn_rows, l_out=L_out),
        grid=(G,),
        in_specs=[
            pl.BlockSpec((bn_rows, C_in, L_pad), lambda g: (g, 0, 0)),
            pl.BlockSpec((C_out, K * C_in), lambda g: (0, 0)),
        ],
        out_specs=pl.BlockSpec((1, C_out, 2), lambda g: (g, 0, 0)),
        out_shape=jax.ShapeDtypeStruct((G, C_out, 2), jnp.float32),
        compiler_params=cparams,
    )(x_pad, w2d)

    # ---- tiny XLA epilogue: reduce partials, fold gamma/beta into scale/shift ----
    totals = jnp.sum(stats, axis=0)                        # (C_out, 2)
    count = jnp.float32(N * L_out)
    mean = totals[:, 0:1] / count                          # (C_out, 1)
    # TODO(synk): E[x^2]-E[x]^2 in f32 can lose precision if |mean| >> std.
    var = jnp.maximum(totals[:, 1:2] / count - mean * mean, 0.0)   # biased var
    inv = jax.lax.rsqrt(var + eps)
    gamma_c = (jnp.ones((C_out, 1), jnp.float32) if gamma is None
               else gamma.reshape(C_out, 1).astype(jnp.float32))
    beta_c = (jnp.zeros((C_out, 1), jnp.float32) if beta is None
              else beta.reshape(C_out, 1).astype(jnp.float32))
    scale = gamma_c * inv                                  # (C_out, 1)
    shift = beta_c - mean * scale                          # (C_out, 1)

    # ---- pass 2: recompute conv (bit-identical from bf16 inputs), FMA + act ----
    out = pl.pallas_call(
        functools.partial(_conv_bn_act_kernel, ksize=K, stride=stride,
                          dilation=dilation, bn_rows=bn_rows, l_out=L_out,
                          neg_slope=neg_slope),
        grid=(G,),
        in_specs=[
            pl.BlockSpec((bn_rows, C_in, L_pad), lambda g: (g, 0, 0)),
            pl.BlockSpec((C_out, K * C_in), lambda g: (0, 0)),
            pl.BlockSpec((C_out, 1), lambda g: (0, 0)),
            pl.BlockSpec((C_out, 1), lambda g: (0, 0)),
        ],
        out_specs=pl.BlockSpec((bn_rows, C_out, L_out), lambda g: (g, 0, 0)),
        out_shape=jax.ShapeDtypeStruct((N, C_out, L_out), jnp.float32),
        compiler_params=cparams,
    )(x_pad, w2d, scale, shift)
    return out


# --------------------------------------------------------------------------
# Deterministic parameter init (mirrors the PyTorch __init__)
# --------------------------------------------------------------------------
def init_conv_block_params(key, in_channels, out_channels, kernel_size):
    kw, kb = jax.random.split(key)
    gain = (2.0 / (1.0 + 0.01 ** 2)) ** 0.5          # calculate_gain('leaky_relu')
    fan_in = in_channels * kernel_size
    fan_out = out_channels * kernel_size
    bound_w = gain * (6.0 / (fan_in + fan_out)) ** 0.5
    weight = jax.random.uniform(
        kw, (out_channels, in_channels, kernel_size),
        minval=-bound_w, maxval=bound_w, dtype=jnp.float32)
    bound_b = 1.0 / (fan_in ** 0.5)
    bias = jax.random.uniform(
        kb, (out_channels,), minval=-bound_b, maxval=bound_b, dtype=jnp.float32)
    return weight, bias


if __name__ == "__main__":
    key = jax.random.PRNGKey(0)
    k_x, k_p = jax.random.split(key)

    # Small shapes consistent with ConvBlock's Conv1d forward: x is (N, C_in, L).
    N, C_IN, C_OUT, L, K = 2, 4, 8, 16, 3
    STRIDE, PADDING, DILATION = 1, 1, 1

    x = jax.random.normal(k_x, (N, C_IN, L), dtype=jnp.float32)
    weight, bias = init_conv_block_params(k_p, C_IN, C_OUT, K)

    out = conv_block_forward(x, weight, bias,
                             stride=STRIDE, padding=PADDING, dilation=DILATION)
    out = jax.block_until_ready(out)

    L_OUT = (L + 2 * PADDING - DILATION * (K - 1) - 1) // STRIDE + 1
    assert out.shape == (N, C_OUT, L_OUT), out.shape
    assert bool(jnp.all(jnp.isfinite(out)))

    # Plain-JAX reference (bf16 conv operands to match the kernel's MXU path,
    # f32 accumulation / BN / LeakyReLU), checked at loose-ish tolerance.
    xp = jnp.pad(x, ((0, 0), (0, 0), (PADDING, PADDING)))
    xb = xp.astype(jnp.bfloat16).astype(jnp.float32)
    wb = weight.astype(jnp.bfloat16).astype(jnp.float32)
    y_full = jnp.zeros((N, C_OUT, L_OUT), jnp.float32)
    for k in range(K):
        xk = xb[:, :, k * DILATION: k * DILATION + L_OUT]          # stride == 1
        y_full = y_full + jnp.einsum('oc,bcl->bol', wb[:, :, k], xk)
    mean = y_full.mean(axis=(0, 2), keepdims=True)
    var = ((y_full - mean) ** 2).mean(axis=(0, 2), keepdims=True)  # biased
    z = (y_full - mean) / jnp.sqrt(var + 1e-5)
    ref = jnp.where(z > 0, z, 0.01 * z)
    assert bool(jnp.allclose(out, ref, atol=1e-3, rtol=1e-3)), \
        float(jnp.max(jnp.abs(out - ref)))

    print("KERNEL_OK")
</pallas_src>

<mosaic_0001>
module attributes {stable_mosaic.version = 11 : i64} {
  func.func @_conv_stats_kernel(%arg0: i32, %arg1: memref<2x4x18xbf16, #tpu.memory_space<vmem>>, %arg2: memref<8x12xbf16, #tpu.memory_space<vmem>>, %arg3: memref<1x8x2xf32, #tpu.memory_space<vmem>>) attributes {dimension_semantics = [#tpu.dimension_semantics<parallel>], iteration_bounds = array<i64: 1>, scalar_prefetch = 0 : i64, scratch_operands = 0 : i64, tpu.core_type = #tpu.core_type<tc>, window_params = [{transform_indices = @transform_0, window_bounds = array<i64: 2, 4, 18>}, {pipeline_mode = #tpu.pipeline_mode<synchronous>, transform_indices = @transform_1, window_bounds = array<i64: 8, 12>}, {transform_indices = @transform_2, window_bounds = array<i64: 1, 8, 2>}]} {
    %c0 = arith.constant 0 : index
    %c0_0 = arith.constant 0 : index
    %0 = vector.load %arg2[%c0, %c0_0] : memref<8x12xbf16, #tpu.memory_space<vmem>>, vector<8x12xbf16>
    %cst = arith.constant 0.000000e+00 : f32
    %1 = vector.broadcast %cst : f32 to vector<8x1xf32>
    %cst_1 = arith.constant 0.000000e+00 : f32
    %2 = vector.broadcast %cst_1 : f32 to vector<8x1xf32>
    %c0_2 = arith.constant 0 : index
    %c0_3 = arith.constant 0 : index
    %c0_4 = arith.constant 0 : index
    %3 = vector.load %arg1[%c0_2, %c0_3, %c0_4] : memref<2x4x18xbf16, #tpu.memory_space<vmem>>, vector<1x4x16xbf16>
    %4 = vector.shape_cast %3 : vector<1x4x16xbf16> to vector<4x16xbf16>
    %c0_5 = arith.constant 0 : index
    %c0_6 = arith.constant 0 : index
    %c1 = arith.constant 1 : index
    %5 = vector.load %arg1[%c0_5, %c0_6, %c1] : memref<2x4x18xbf16, #tpu.memory_space<vmem>>, vector<1x4x16xbf16>
    %6 = vector.shape_cast %5 : vector<1x4x16xbf16> to vector<4x16xbf16>
    %c0_7 = arith.constant 0 : index
    %c0_8 = arith.constant 0 : index
    %c2 = arith.constant 2 : index
    %7 = vector.load %arg1[%c0_7, %c0_8, %c2] : memref<2x4x18xbf16, #tpu.memory_space<vmem>>, vector<1x4x16xbf16>
    %8 = vector.shape_cast %7 : vector<1x4x16xbf16> to vector<4x16xbf16>
    %9 = tpu.concatenate %4, %6, %8 in 0 : vector<4x16xbf16>, vector<4x16xbf16>, vector<4x16xbf16> -> vector<12x16xbf16>
    %cst_9 = arith.constant dense<0.000000e+00> : vector<8x16xf32>
    %10 = tpu.matmul %0, %9, %cst_9 {dimension_numbers = #tpu.dot_dimension_numbers<[1], [0], [0], [1], [0, 0, 1, 1], [], []>} : vector<8x12xbf16>, vector<12x16xbf16>, vector<8x16xf32> -> vector<8x16xf32>
    %cst_10 = arith.constant dense<0.000000e+00> : vector<8xf32>
    %11 = vector.multi_reduction <add>, %10, %cst_10 [1] : vector<8x16xf32> to vector<8xf32>
    %12 = vector.shape_cast %11 : vector<8xf32> to vector<8x1xf32>
    %13 = arith.addf %1, %12 : vector<8x1xf32>
    %14 = arith.mulf %10, %10 : vector<8x16xf32>
    %cst_11 = arith.constant dense<0.000000e+00> : vector<8xf32>
    %15 = vector.multi_reduction <add>, %14, %cst_11 [1] : vector<8x16xf32> to vector<8xf32>
    %16 = vector.shape_cast %15 : vector<8xf32> to vector<8x1xf32>
    %17 = arith.addf %2, %16 : vector<8x1xf32>
    %c1_12 = arith.constant 1 : index
    %c0_13 = arith.constant 0 : index
    %c0_14 = arith.constant 0 : index
    %18 = vector.load %arg1[%c1_12, %c0_13, %c0_14] : memref<2x4x18xbf16, #tpu.memory_space<vmem>>, vector<1x4x16xbf16>
    %19 = vector.shape_cast %18 : vector<1x4x16xbf16> to vector<4x16xbf16>
    %c1_15 = arith.constant 1 : index
    %c0_16 = arith.constant 0 : index
    %c1_17 = arith.constant 1 : index
    %20 = vector.load %arg1[%c1_15, %c0_16, %c1_17] : memref<2x4x18xbf16, #tpu.memory_space<vmem>>, vector<1x4x16xbf16>
    %21 = vector.shape_cast %20 : vector<1x4x16xbf16> to vector<4x16xbf16>
    %c1_18 = arith.constant 1 : index
    %c0_19 = arith.constant 0 : index
    %c2_20 = arith.constant 2 : index
    %22 = vector.load %arg1[%c1_18, %c0_19, %c2_20] : memref<2x4x18xbf16, #tpu.memory_space<vmem>>, vector<1x4x16xbf16>
    %23 = vector.shape_cast %22 : vector<1x4x16xbf16> to vector<4x16xbf16>
    %24 = tpu.concatenate %19, %21, %23 in 0 : vector<4x16xbf16>, vector<4x16xbf16>, vector<4x16xbf16> -> vector<12x16xbf16>
    %cst_21 = arith.constant dense<0.000000e+00> : vector<8x16xf32>
    %25 = tpu.matmul %0, %24, %cst_21 {dimension_numbers = #tpu.dot_dimension_numbers<[1], [0], [0], [1], [0, 0, 1, 1], [], []>} : vector<8x12xbf16>, vector<12x16xbf16>, vector<8x16xf32> -> vector<8x16xf32>
    %cst_22 = arith.constant dense<0.000000e+00> : vector<8xf32>
    %26 = vector.multi_reduction <add>, %25, %cst_22 [1] : vector<8x16xf32> to vector<8xf32>
    %27 = vector.shape_cast %26 : vector<8xf32> to vector<8x1xf32>
    %28 = arith.addf %13, %27 : vector<8x1xf32>
    %29 = arith.mulf %25, %25 : vector<8x16xf32>
    %cst_23 = arith.constant dense<0.000000e+00> : vector<8xf32>
    %30 = vector.multi_reduction <add>, %29, %cst_23 [1] : vector<8x16xf32> to vector<8xf32>
    %31 = vector.shape_cast %30 : vector<8xf32> to vector<8x1xf32>
    %32 = arith.addf %17, %31 : vector<8x1xf32>
    %33 = tpu.concatenate %28, %32 in 1 : vector<8x1xf32>, vector<8x1xf32> -> vector<8x2xf32>
    %c0_24 = arith.constant 0 : index
    %c0_25 = arith.constant 0 : index
    %c0_26 = arith.constant 0 : index
    %34 = vector.load %arg3[%c0_24, %c0_25, %c0_26] : memref<1x8x2xf32, #tpu.memory_space<vmem>>, vector<1x8x2xf32>
    %35 = vector.shape_cast %34 : vector<1x8x2xf32> to vector<8x2xf32>
    %36 = vector.shape_cast %33 : vector<8x2xf32> to vector<1x8x2xf32>
    tpu.vector_store %arg3[%c0_24, %c0_25, %c0_26], %36 {strides = array<i32>} : memref<1x8x2xf32, #tpu.memory_space<vmem>>, vector<1x8x2xf32>,
    return
  }
  func.func @transform_0(%arg0: i32) -> (i32, i32, i32) {
    %c0_i32 = arith.constant 0 : i32
    %c0_i32_0 = arith.constant 0 : i32
    %c0_i32_1 = arith.constant 0 : i32
    return %arg0, %c0_i32, %c0_i32_0 : i32, i32, i32
  }
  func.func @transform_1(%arg0: i32) -> (i32, i32) {
    %c0_i32 = arith.constant 0 : i32
    %c0_i32_0 = arith.constant 0 : i32
    %c0_i32_1 = arith.constant 0 : i32
    return %c0_i32, %c0_i32_0 : i32, i32
  }
  func.func @transform_2(%arg0: i32) -> (i32, i32, i32) {
    %c0_i32 = arith.constant 0 : i32
    %c0_i32_0 = arith.constant 0 : i32
    %c0_i32_1 = arith.constant 0 : i32
    return %arg0, %c0_i32, %c0_i32_0 : i32, i32, i32
  }
}

</mosaic_0001>

<llo_original>
// kernel: tpu_custom_call.1
$region0: #{tpu_custom_call.1}
  #allocation0 [shape = 'u32[]', space=smem, size = 0x4, offset = 0x4, fixed_abs, tag = 'smem constant byte address 0x4 - core index']
  #allocation1 [shape = 'u32[72,128]{1,0:T(1,128)}', space=vmem, size = 0x9000, scoped, tag = 'internal scratch']
  %s0 = inlined_call_operand.hbm [shape: bf16[2,4,18], index: 0, kind: input, shape index: {}]
  %s1 = inlined_call_operand.hbm [shape: bf16[8,12], index: 1, kind: input, shape index: {}]
  %s2 = inlined_call_operand.vmem [shape: f32[1,8,2], index: 2, kind: output, shape index: {}]
  %s3 = sld [smem:[#allocation0]]
  $region26: #{tpu_custom_call.1} parent=0
    _
  %s5 = ssub.s32 1, %s3
  %s6 = scalar_select 0, %s5, %s3
  $region1: #{tpu_custom_call.1} parent=0
    #allocation2 [shape = 'u8[2048]{0}', space=vmem, size = 0x800, scoped, tag = 'input window, operand 0, single buffered']
    #allocation3 [shape = 's32[1]{0}', space=sflag, size = 0x4, scoped, tag = 'scoped memory for tpu_custom_call.1']
    #allocation4 [shape = 'u8[2048]{0}', space=vmem, size = 0x800, scoped, tag = 'input window, operand 1, single buffered']
    #allocation5 [shape = 's32[1]{0}', space=sflag, size = 0x4, scoped, tag = 'scoped memory for tpu_custom_call.1']
    %7 = vsyncpa [#allocation3], 0
    %8 = vsyncpa [#allocation5], 0
    // Predicated region
    $region2: #{tpu_custom_call.1} parent=1 // pred_check
      _
    $region3: #{tpu_custom_call.1} parent=1 // pred_check_branch
      %10 = sbr.rel (0) target = $region5
    $region4: #{tpu_custom_call.1} parent=1 // pred_region
      %12 = vsyncadd [#allocation3], 0
      %s13 = sshll.u32 %s0, 4
      %s14 = int_to_ptr.hbm [resolvable:$true] %s13
      %s15 = sshll.u32 [#allocation2], 4
      %s16 = int_to_ptr.vmem [resolvable:$true] %s15
      %21 = dma.hbm_to_vmem [thread:$0]  %s14, 64, %s16, [#allocation3], 32, 32, 2
    $region5: #{tpu_custom_call.1} parent=1 // pred_fallthru
      _
    // Predicated region
    $region6: #{tpu_custom_call.1} parent=1 // pred_check
      _
    $region7: #{tpu_custom_call.1} parent=1 // pred_check_branch
      %23 = sbr.rel (0) target = $region9
    $region8: #{tpu_custom_call.1} parent=1 // pred_region
      %25 = vsyncadd [#allocation5], 0
      %s27 = sshll.u32 %s1, 4
      %s28 = int_to_ptr.hbm [resolvable:$true] %s27
      %s29 = sshll.u32 [#allocation4], 4
      %s30 = int_to_ptr.vmem [resolvable:$true] %s29
      %32 = dma.hbm_to_vmem [thread:$0]  %s28, 64, %s30, [#allocation5]
    $region9: #{tpu_custom_call.1} parent=1 // pred_fallthru
      _
    // Predicated region
    $region10: #{tpu_custom_call.1} parent=1 // pred_check
      _
    $region11: #{tpu_custom_call.1} parent=1 // pred_check_branch
      %34 = sbr.rel (0) target = $region13
    $region12: #{tpu_custom_call.1} parent=1 // pred_region
      %36 = dma.done [#allocation3], 64
    $region13: #{tpu_custom_call.1} parent=1 // pred_fallthru
      _
    // Predicated region
    $region14: #{tpu_custom_call.1} parent=1 // pred_check
      _
    $region15: #{tpu_custom_call.1} parent=1 // pred_check_branch
      %38 = sbr.rel (0) target = $region17
    $region16: #{tpu_custom_call.1} parent=1 // pred_region
      %40 = dma.done [#allocation5], 64
    $region17: #{tpu_custom_call.1} parent=1 // pred_fallthru
      _
    %v42 = vld [vmem:[#allocation4] sm:$0xf]
    %v43 = vld [vmem:[#allocation2] sm:$0x3]
    %s45 = scalar_lea.vmem [#allocation1], 1
    %46 = vst [vmem:[%s45] ss:$4 sm:$0xff] %v43
    %v47 = vld.sshfl [vmem:[#allocation1] sm:$0xff pattern:$0x73625140]
    %49 = vrot.lane.b32.xlu0 %v47, 127
    %v50 = vpop.permute.xlu0 %49
    %s51 = scalar_lea.vmem [#allocation1], 2
    %52 = vst [vmem:[%s51] ss:$4 sm:$0xff] %v43
    %v53 = vld.sshfl [vmem:[#allocation1] sm:$0xff pattern:$0x73625140]
    %55 = vrot.lane.b32.xlu0 %v53, 126
    %v56 = vpop.permute.xlu0 %55
    %vm57 = vcmask 1041408
    %v59 = vsel %vm57, %v43, %v50
    %vm60 = vcmask 1043456
    %v62 = vsel %vm60, %v59, %v56
    %vm63 = vcmask 97280
    %v65 = vsel %vm63, %v42, 0
    %vm67 = vcmask 1045504
    %v68 = vsel %vm67, %v62, 0
    %70 = vmatpush.bf16.msra.mxu0 0
    %71 = vmatpush.bf16.msra.mxu0 0
    %72 = vmatpush.bf16.msra.mxu0 0
    %73 = vmatpush.bf16.msra.mxu0 0
    %74 = vmatpush.bf16.msra.mxu0 0
    %75 = vmatpush.bf16.msra.mxu0 0
    %76 = vmatpush.bf16.msra.mxu0 0
    %77 = vmatpush.bf16.msra.mxu0 %v68
    %78 = vmatmul.bf16.gmra.mxu0 %v65
    %v79 = vpop.f32.mrf.mxu0
    %v80 = vadd.f32 0.0, %v79
    %v81 = vpop.f32.mrf.mxu0
    %82 = vdwg.mxu0
    %vm83 = vcmask 130048
    %v84 = vsel %vm83, %v80, 0.0
    %85 = vadd.xlane.f32.xlu0 %v84
    %v86 = vpop.xlane.xlu0 %85
    %v87 = vadd.f32 %v86, 0.0
    %v88 = vmul.f32 %v80, %v80
    %v89 = vsel %vm83, %v88, 0.0
    %90 = vadd.xlane.f32.xlu0 %v89
    %v91 = vpop.xlane.xlu0 %90
    %v92 = vadd.f32 %v91, 0.0
    %s93 = scalar_lea.vmem [#allocation2], 2
    %v94 = vld [vmem:[%s93] sm:$0x3]
    %s96 = scalar_lea.vmem [#allocation1], 1
    %97 = vst [vmem:[%s96] ss:$4 sm:$0xff] %v94
    %v98 = vld.sshfl [vmem:[#allocation1] sm:$0xff pattern:$0x73625140]
    %100 = vrot.lane.b32.xlu0 %v98, 127
    %v101 = vpop.permute.xlu0 %100
    %s102 = scalar_lea.vmem [#allocation1], 2
    %103 = vst [vmem:[%s102] ss:$4 sm:$0xff] %v94
    %v104 = vld.sshfl [vmem:[#allocation1] sm:$0xff pattern:$0x73625140]
    %106 = vrot.lane.b32.xlu0 %v104, 126
    %v107 = vpop.permute.xlu0 %106
    %v109 = vsel %vm57, %v94, %v101
    %v111 = vsel %vm60, %v109, %v107
    %v112 = vsel %vm67, %v111, 0
    %114 = vmatpush.bf16.msra.mxu0 0
    %115 = vmatpush.bf16.msra.mxu0 0
    %116 = vmatpush.bf16.msra.mxu0 0
    %117 = vmatpush.bf16.msra.mxu0 0
    %118 = vmatpush.bf16.msra.mxu0 0
    %119 = vmatpush.bf16.msra.mxu0 0
    %120 = vmatpush.bf16.msra.mxu0 0
    %121 = vmatpush.bf16.msra.mxu0 %v112
    %122 = vmatmul.bf16.gmra.mxu0 %v65
    %v123 = vpop.f32.mrf.mxu0
    %v124 = vadd.f32 0.0, %v123
    %v125 = vpop.f32.mrf.mxu0
    %126 = vdwg.mxu0
    %v127 = vsel %vm83, %v124, 0.0
    %128 = vadd.xlane.f32.xlu0 %v127
    %v129 = vpop.xlane.xlu0 %128
    %v130 = vadd.f32 %v87, %v129
    %v131 = vmul.f32 %v124, %v124
    %v132 = vsel %vm83, %v131, 0.0
    %133 = vadd.xlane.f32.xlu0 %v132
    %v134 = vpop.xlane.xlu0 %133
    %v135 = vadd.f32 %v92, %v134
    %vm136 = vcmask 7168
    %v137 = vsel %vm136, %v130, %v135
    %vm138 = vcmask 15360
    %139 = vst.msk [vmem:[%s2] sm:$0xff] %vm138, %v137
    // Predicated region
    $region18: #{tpu_custom_call.1} parent=1 // pred_check
      _
    $region19: #{tpu_custom_call.1} parent=1 // pred_check_branch
      %141 = sbr.rel (0) target = $region21
    $region20: #{tpu_custom_call.1} parent=1 // pred_region
      _
    $region21: #{tpu_custom_call.1} parent=1 // pred_fallthru
      _
    // Predicated region
    $region22: #{tpu_custom_call.1} parent=1 // pred_check
      _
    $region23: #{tpu_custom_call.1} parent=1 // pred_check_branch
      %143 = sbr.rel (0) target = $region25
    $region24: #{tpu_custom_call.1} parent=1 // pred_region
      _
    $region25: #{tpu_custom_call.1} parent=1 // pred_fallthru
      _
    %144 = vsyncpa [#allocation3], 1
    %145 = vsyncpa [#allocation5], 1

</llo_original>
